<compile_context>
chip_gen: v7x
topology: tpu7x:2x2x1
jax: 0.10.0
libtpu: 0.0.40
codegen_flags: <defaults>
</compile_context>

<pallas_src>
import math
import functools

import jax
import jax.numpy as jnp
from jax.experimental import pallas as pl
from jax.experimental.pallas import tpu as pltpu


# ---------------------------------------------------------------------------
# Kernel 1: fused Q/K/V projection -> three [M, H] outputs.
# ---------------------------------------------------------------------------
def _qkv_proj_kernel(x_ref, w_ref, b_ref, q_ref, k_ref, v_ref):
    # x_ref: (tm, H)  w_ref: (H, 3H) resident  b_ref: (1, 3H)
    acc = jnp.dot(x_ref[...], w_ref[...], preferred_element_type=jnp.float32)
    acc = acc + b_ref[...].astype(jnp.float32)
    h = q_ref.shape[-1]
    q_ref[...] = acc[:, :h].astype(q_ref.dtype)
    k_ref[...] = acc[:, h:2 * h].astype(k_ref.dtype)
    v_ref[...] = acc[:, 2 * h:].astype(v_ref.dtype)


def _pick_tile(dim, preferred, align):
    """Largest multiple of `align` <= preferred that divides `dim`, else full dim."""
    t = min(preferred, (dim // align) * align)
    while t >= align:
        if dim % t == 0:
            return t
        t -= align
    return dim


def _qkv_projection(x2d, w_qkv, b_qkv, hidden_size):
    M, Hin = x2d.shape
    N3 = w_qkv.shape[1]
    dtype = x2d.dtype
    itemsize = jnp.dtype(dtype).itemsize

    # Large row tiles so the resident W is amortized over few grid steps.
    sub_align = 16 if dtype == jnp.bfloat16 else 8
    tm = _pick_tile(M, 512, sub_align)
    grid = (M // tm,)

    # Derive the VMEM budget from tile sizes (double-buffered streams +
    # resident W + fp32 accumulator), clamped for v7x headroom.
    vmem_bytes = (2 * (tm * Hin + 3 * tm * hidden_size) * itemsize
                  + 2 * (Hin * N3 + N3) * itemsize
                  + tm * N3 * 4 + (2 << 20))
    vmem_limit = int(min(max(vmem_bytes, 4 << 20), 48 << 20))

    cost = pl.CostEstimate(
        flops=2 * M * Hin * N3,
        transcendentals=0,
        bytes_accessed=(M * Hin + Hin * N3 + N3 + M * N3) * itemsize,
    )

    out_shape = tuple(jax.ShapeDtypeStruct((M, hidden_size), dtype) for _ in range(3))
    out_specs = tuple(pl.BlockSpec((tm, hidden_size), lambda i: (i, 0)) for _ in range(3))

    return pl.pallas_call(
        _qkv_proj_kernel,
        out_shape=out_shape,
        grid_spec=pltpu.PrefetchScalarGridSpec(
            num_scalar_prefetch=0,
            grid=grid,
            in_specs=[
                pl.BlockSpec((tm, Hin), lambda i: (i, 0)),   # x tile (streams)
                pl.BlockSpec((Hin, N3), lambda i: (0, 0)),   # W: grid-invariant, DMA'd once
                pl.BlockSpec((1, N3), lambda i: (0, 0)),     # bias: grid-invariant
            ],
            out_specs=out_specs,
        ),
        compiler_params=pltpu.CompilerParams(
            dimension_semantics=("parallel",),
            vmem_limit_bytes=vmem_limit,
        ),
        cost_estimate=cost,
    )(x2d, w_qkv, b_qkv)


# ---------------------------------------------------------------------------
# Kernel 2: attention over a group of G heads per (batch, group) grid step.
# ---------------------------------------------------------------------------
def _attention_kernel(q_ref, k_ref, v_ref, m_ref, o_ref, *p_refs,
                      heads, head_dim, scale):
    # q/k/v/o blocks: (1, S, heads*head_dim)   m_ref: (1, mq, S)
    mask = m_ref[0].astype(jnp.float32)              # (mq, S); broadcasts over rows
    ctx_parts = []
    for g in range(heads):                           # static unrolled loop
        lo, hi = g * head_dim, (g + 1) * head_dim
        q = q_ref[0, :, lo:hi]                       # (S, d) activation dtype
        k = k_ref[0, :, lo:hi]
        v = v_ref[0, :, lo:hi]

        # Fold 1/sqrt(d) into q (S*d muls, not S*S).  MXU operands stay in the
        # activation dtype (bf16 on bf16 models); accumulate in fp32.
        s = jnp.einsum("qd,kd->qk", q * scale, k,
                       preferred_element_type=jnp.float32)       # (S, S) fp32
        s = s + mask                                             # additive mask, fp32

        # Numerically stable softmax with deferred normalization.
        s_max = jnp.max(s, axis=-1, keepdims=True)
        e = jnp.exp(s - s_max)        # fp32 exp (portable; bf16 exp is a v6e/v7x option)
        inv = pl.reciprocal(jnp.sum(e, axis=-1, keepdims=True), approx=True)

        # TODO(synk): attention dropout omitted (eval-mode identity).
        ctx = jnp.dot(e.astype(v.dtype), v,
                      preferred_element_type=jnp.float32)        # (S, d)
        ctx_parts.append((ctx * inv).astype(o_ref.dtype))
        if p_refs:                                               # optional probs output
            p_refs[0][0, g] = (e * inv).astype(p_refs[0].dtype)

    # One lane-dense (S, G*d) store straight into the merged-heads layout.
    o_ref[0] = ctx_parts[0] if heads == 1 else jnp.concatenate(ctx_parts, axis=-1)


def _pick_head_group(nh, d, S, itemsize, with_probs):
    """Heads per grid step: divisor of nh, lane-dense (G*d % 128 == 0 or G == nh),
    biggest that keeps the per-step VMEM footprint modest."""
    valid = [g for g in range(1, nh + 1)
             if nh % g == 0 and ((g * d) % 128 == 0 or g == nh)]
    budget = 24 << 20

    def per_step(g):
        c = 2 * 4 * S * g * d * itemsize + 3 * S * S * 4
        if with_probs:
            c += 2 * g * S * S * itemsize
        return c

    fitting = [g for g in valid if per_step(g) <= budget]
    return max(fitting) if fitting else min(valid)


# ---------------------------------------------------------------------------
# Wrapper: full BertSelfAttention forward.
# ---------------------------------------------------------------------------
def bert_self_attention(hidden_states, wq, bq, wk, bk, wv, bv, *,
                        num_attention_heads,
                        attention_mask=None,
                        output_attentions=False):
    """hidden_states: [B,S,H]; wq/wk/wv: [H,H] (PyTorch [out,in] layout); bq/bk/bv: [H].
    attention_mask is ADDITIVE (as in the PyTorch module), broadcastable to
    [B, nh, S, S]; accepted shapes: [B,1,1,S], [B,1,q,S], [B,q,S], [B,S], None."""
    B, S, H = hidden_states.shape
    nh = num_attention_heads
    assert H % nh == 0, "hidden_size must be a multiple of num_attention_heads"
    d = H // nh
    M = B * S
    dtype = hidden_states.dtype
    itemsize = jnp.dtype(dtype).itemsize

    # One fused GEMM for the three projections (PyTorch Linear weight is [out,in]).
    w_qkv = jnp.concatenate([wq.T, wk.T, wv.T], axis=1)          # [H, 3H]
    b_qkv = jnp.concatenate([bq, bk, bv]).reshape(1, 3 * H)

    q2d, k2d, v2d = _qkv_projection(hidden_states.reshape(M, H), w_qkv, b_qkv, H)
    # [M,H] -> [B,S,H] is metadata-only; heads remain packed along the lane axis.
    q = q2d.reshape(B, S, H)
    k = k2d.reshape(B, S, H)
    v = v2d.reshape(B, S, H)

    # Normalize the additive mask to (B, mq, S) in fp32 (added to fp32 scores).
    if attention_mask is None:
        mask = jnp.zeros((B, 1, S), jnp.float32)
    else:
        m = jnp.asarray(attention_mask, jnp.float32)
        if m.ndim == 4:
            if m.shape[1] != 1:
                raise ValueError("per-head attention masks are not supported")
            m = m[:, 0]                      # [B,1,q,S] -> [B,q,S]
        elif m.ndim == 2:
            m = m[:, None, :]                # [B,S] -> [B,1,S]
        elif m.ndim != 3:
            raise ValueError(f"unsupported attention_mask rank {m.ndim}")
        if m.shape[1] not in (1, S):
            raise ValueError("attention_mask query dim must be 1 or S")
        mask = jnp.broadcast_to(m, (B, m.shape[1], S))
    mq = mask.shape[1]
    # TODO(synk): head_mask (per-head multiplicative mask) not supported.

    G = _pick_head_group(nh, d, S, itemsize, output_attentions)
    nG = nh // G
    gd = G * d
    scale = 1.0 / math.sqrt(d)

    out_shapes = [jax.ShapeDtypeStruct((B, S, H), dtype)]
    out_specs = [pl.BlockSpec((1, S, gd), lambda b, g: (b, 0, g))]
    if output_attentions:
        out_shapes.append(jax.ShapeDtypeStruct((B, nh, S, S), dtype))
        out_specs.append(pl.BlockSpec((1, G, S, S), lambda b, g: (b, g, 0, 0)))

    vmem_bytes = (2 * 4 * S * gd * itemsize + 2 * mq * S * 4
                  + 4 * S * S * 4 + (2 << 20))
    if output_attentions:
        vmem_bytes += 2 * G * S * S * itemsize
    vmem_limit = int(min(max(vmem_bytes, 4 << 20), 48 << 20))

    bytes_accessed = (4 * B * S * H) * itemsize + B * mq * S * 4
    if output_attentions:
        bytes_accessed += B * nh * S * S * itemsize
    cost = pl.CostEstimate(
        flops=4 * B * nh * S * S * d,
        transcendentals=B * nh * S * S + B * nh * S,
        bytes_accessed=bytes_accessed,
    )

    outs = pl.pallas_call(
        functools.partial(_attention_kernel, heads=G, head_dim=d, scale=scale),
        out_shape=tuple(out_shapes),
        grid_spec=pltpu.PrefetchScalarGridSpec(
            num_scalar_prefetch=0,
            grid=(B, nG),
            in_specs=[
                pl.BlockSpec((1, S, gd), lambda b, g: (b, 0, g)),   # q (head group)
                pl.BlockSpec((1, S, gd), lambda b, g: (b, 0, g)),   # k
                pl.BlockSpec((1, S, gd), lambda b, g: (b, 0, g)),   # v
                pl.BlockSpec((1, mq, S), lambda b, g: (b, 0, 0)),   # additive mask
            ],
            out_specs=tuple(out_specs),
        ),
        compiler_params=pltpu.CompilerParams(
            dimension_semantics=("parallel", "parallel"),
            vmem_limit_bytes=vmem_limit,
        ),
        cost_estimate=cost,
    )(q, k, v, mask)

    if output_attentions:
        context, probs = outs
        return context, probs          # already [B,S,H] and [B,nh,S,S]
    (context,) = outs
    return context


if __name__ == "__main__":
    # Small BERT-like config: batch=2, seq=8, hidden=64, 4 heads (head_dim=16).
    B, S, H, NH = 2, 8, 64, 4

    key = jax.random.PRNGKey(0)
    ks = jax.random.split(key, 7)
    hidden_states = jax.random.normal(ks[0], (B, S, H), dtype=jnp.float32)
    wq = jax.random.normal(ks[1], (H, H), dtype=jnp.float32) * 0.05
    wk = jax.random.normal(ks[2], (H, H), dtype=jnp.float32) * 0.05
    wv = jax.random.normal(ks[3], (H, H), dtype=jnp.float32) * 0.05
    bq = jax.random.normal(ks[4], (H,), dtype=jnp.float32) * 0.05
    bk = jax.random.normal(ks[5], (H,), dtype=jnp.float32) * 0.05
    bv = jax.random.normal(ks[6], (H,), dtype=jnp.float32) * 0.05

    # BERT-style additive attention mask [B,1,1,S]: 0 = keep, -10000 = masked.
    key_valid = jnp.array([[1.0] * S,
                           [1.0] * (S - 2) + [0.0, 0.0]], dtype=jnp.float32)
    attention_mask = (1.0 - key_valid)[:, None, None, :] * -10000.0

    context, probs = bert_self_attention(
        hidden_states, wq, bq, wk, bk, wv, bv,
        num_attention_heads=NH,
        attention_mask=attention_mask,
        output_attentions=True,
    )
    jax.block_until_ready((context, probs))

    # ---- pure-JAX reference mirroring the PyTorch forward ----
    def ref_forward(x, mask):
        q = x @ wq.T + bq
        k = x @ wk.T + bk
        v = x @ wv.T + bv

        def split(t):
            return t.reshape(B, S, NH, H // NH).transpose(0, 2, 1, 3)

        qh, kh, vh = split(q), split(k), split(v)
        scores = jnp.einsum("bhqd,bhkd->bhqk", qh, kh) / math.sqrt(H // NH)
        if mask is not None:
            scores = scores + mask
        p = jax.nn.softmax(scores, axis=-1)
        ctx = jnp.einsum("bhqk,bhkd->bhqd", p, vh)
        ctx = ctx.transpose(0, 2, 1, 3).reshape(B, S, H)
        return ctx, p

    ref_ctx, ref_p = ref_forward(hidden_states, attention_mask)
    # approx reciprocal in the softmax normalization -> slightly looser tolerance
    assert jnp.allclose(context, ref_ctx, atol=2e-3, rtol=2e-3), "context mismatch"
    assert jnp.allclose(probs, ref_p, atol=2e-3, rtol=2e-3), "probs mismatch"

    # No-mask, context-only path.
    ctx_nm = bert_self_attention(hidden_states, wq, bq, wk, bk, wv, bv,
                                 num_attention_heads=NH)
    jax.block_until_ready(ctx_nm)
    ref_ctx_nm, _ = ref_forward(hidden_states, None)
    assert jnp.allclose(ctx_nm, ref_ctx_nm, atol=2e-3, rtol=2e-3), "no-mask mismatch"

    print("KERNEL_OK")
</pallas_src>

<mosaic_0001>
module attributes {stable_mosaic.version = 11 : i64} {
  func.func @_qkv_proj_kernel(%arg0: i32, %arg1: memref<16x64xf32, #tpu.memory_space<vmem>>, %arg2: memref<64x192xf32, #tpu.memory_space<vmem>>, %arg3: memref<1x192xf32, #tpu.memory_space<vmem>>, %arg4: memref<16x64xf32, #tpu.memory_space<vmem>>, %arg5: memref<16x64xf32, #tpu.memory_space<vmem>>, %arg6: memref<16x64xf32, #tpu.memory_space<vmem>>) attributes {dimension_semantics = [#tpu.dimension_semantics<parallel>], iteration_bounds = array<i64: 1>, scalar_prefetch = 0 : i64, scratch_operands = 0 : i64, tpu.core_type = #tpu.core_type<tc>, window_params = [{transform_indices = @transform_0, window_bounds = array<i64: 16, 64>}, {pipeline_mode = #tpu.pipeline_mode<synchronous>, transform_indices = @transform_1, window_bounds = array<i64: 64, 192>}, {pipeline_mode = #tpu.pipeline_mode<synchronous>, transform_indices = @transform_2, window_bounds = array<i64: 1, 192>}, {transform_indices = @transform_3, window_bounds = array<i64: 16, 64>}, {transform_indices = @transform_4, window_bounds = array<i64: 16, 64>}, {transform_indices = @transform_5, window_bounds = array<i64: 16, 64>}]} {
    %c0 = arith.constant 0 : index
    %c0_0 = arith.constant 0 : index
    %0 = vector.load %arg1[%c0, %c0_0] : memref<16x64xf32, #tpu.memory_space<vmem>>, vector<16x64xf32>
    %c0_1 = arith.constant 0 : index
    %c0_2 = arith.constant 0 : index
    %1 = vector.load %arg2[%c0_1, %c0_2] : memref<64x192xf32, #tpu.memory_space<vmem>>, vector<64x192xf32>
    %cst = arith.constant dense<0.000000e+00> : vector<16x192xf32>
    %2 = tpu.matmul %0, %1, %cst {dimension_numbers = #tpu.dot_dimension_numbers<[1], [0], [0], [1], [0, 0, 1, 1], [], []>} : vector<16x64xf32>, vector<64x192xf32>, vector<16x192xf32> -> vector<16x192xf32>
    %c0_3 = arith.constant 0 : index
    %c0_4 = arith.constant 0 : index
    %3 = vector.load %arg3[%c0_3, %c0_4] : memref<1x192xf32, #tpu.memory_space<vmem>>, vector<1x192xf32>
    %4 = vector.broadcast %3 : vector<1x192xf32> to vector<16x192xf32>
    %5 = arith.addf %2, %4 : vector<16x192xf32>
    %6 = vector.extract_strided_slice %5 {offsets = [0, 0], sizes = [16, 64], strides = [1, 1]} : vector<16x192xf32> to vector<16x64xf32>
    %c0_5 = arith.constant 0 : index
    %c0_6 = arith.constant 0 : index
    %7 = vector.load %arg4[%c0_5, %c0_6] : memref<16x64xf32, #tpu.memory_space<vmem>>, vector<16x64xf32>
    tpu.vector_store %arg4[%c0_5, %c0_6], %6 {strides = array<i32>} : memref<16x64xf32, #tpu.memory_space<vmem>>, vector<16x64xf32>,
    %8 = vector.extract_strided_slice %5 {offsets = [0, 64], sizes = [16, 64], strides = [1, 1]} : vector<16x192xf32> to vector<16x64xf32>
    %c0_7 = arith.constant 0 : index
    %c0_8 = arith.constant 0 : index
    %9 = vector.load %arg5[%c0_7, %c0_8] : memref<16x64xf32, #tpu.memory_space<vmem>>, vector<16x64xf32>
    tpu.vector_store %arg5[%c0_7, %c0_8], %8 {strides = array<i32>} : memref<16x64xf32, #tpu.memory_space<vmem>>, vector<16x64xf32>,
    %10 = vector.extract_strided_slice %5 {offsets = [0, 128], sizes = [16, 64], strides = [1, 1]} : vector<16x192xf32> to vector<16x64xf32>
    %c0_9 = arith.constant 0 : index
    %c0_10 = arith.constant 0 : index
    %11 = vector.load %arg6[%c0_9, %c0_10] : memref<16x64xf32, #tpu.memory_space<vmem>>, vector<16x64xf32>
    tpu.vector_store %arg6[%c0_9, %c0_10], %10 {strides = array<i32>} : memref<16x64xf32, #tpu.memory_space<vmem>>, vector<16x64xf32>,
    return
  }
  func.func @transform_0(%arg0: i32) -> (i32, i32) {
    %c0_i32 = arith.constant 0 : i32
    %c0_i32_0 = arith.constant 0 : i32
    return %arg0, %c0_i32 : i32, i32
  }
  func.func @transform_1(%arg0: i32) -> (i32, i32) {
    %c0_i32 = arith.constant 0 : i32
    %c0_i32_0 = arith.constant 0 : i32
    %c0_i32_1 = arith.constant 0 : i32
    return %c0_i32, %c0_i32_0 : i32, i32
  }
  func.func @transform_2(%arg0: i32) -> (i32, i32) {
    %c0_i32 = arith.constant 0 : i32
    %c0_i32_0 = arith.constant 0 : i32
    %c0_i32_1 = arith.constant 0 : i32
    return %c0_i32, %c0_i32_0 : i32, i32
  }
  func.func @transform_3(%arg0: i32) -> (i32, i32) {
    %c0_i32 = arith.constant 0 : i32
    %c0_i32_0 = arith.constant 0 : i32
    return %arg0, %c0_i32 : i32, i32
  }
  func.func @transform_4(%arg0: i32) -> (i32, i32) {
    %c0_i32 = arith.constant 0 : i32
    %c0_i32_0 = arith.constant 0 : i32
    return %arg0, %c0_i32 : i32, i32
  }
  func.func @transform_5(%arg0: i32) -> (i32, i32) {
    %c0_i32 = arith.constant 0 : i32
    %c0_i32_0 = arith.constant 0 : i32
    return %arg0, %c0_i32 : i32, i32
  }
}

</mosaic_0001>

<llo_original>
// kernel: tpu_custom_call.1
$region0: #{tpu_custom_call.1}
  #allocation0 [shape = 'u32[]', space=smem, size = 0x4, offset = 0x4, fixed_abs, tag = 'smem constant byte address 0x4 - core index']
  #allocation1 [shape = 'u32[144,128]{1,0:T(1,128)}', space=vmem, size = 0x12000, scoped, tag = 'internal scratch']
  %s0 = inlined_call_operand.hbm [shape: f32[16,64], index: 0, kind: input, shape index: {}]
  %s1 = inlined_call_operand.hbm [shape: f32[64,192], index: 1, kind: input, shape index: {}]
  %s2 = inlined_call_operand.vmem [shape: f32[1,192], index: 2, kind: input, shape index: {}]
  %s3 = inlined_call_operand.hbm [shape: f32[16,64], index: 3, kind: output, shape index: {0}]
  %s4 = inlined_call_operand.hbm [shape: f32[16,64], index: 4, kind: output, shape index: {1}]
  %s5 = inlined_call_operand.hbm [shape: f32[16,64], index: 5, kind: output, shape index: {2}]
  %6 = xla_tuple %s3, %s4, %s5
  %s7 = sld [smem:[#allocation0]]
  $region46: #{tpu_custom_call.1} parent=0
    _
  %s9 = ssub.s32 1, %s7
  %s10 = scalar_select 0, %s9, %s7
  $region1: #{tpu_custom_call.1} parent=0
    #allocation2 [shape = 'u8[8192]{0}', space=vmem, size = 0x2000, scoped, tag = 'input window, operand 0, single buffered']
    #allocation3 [shape = 's32[1]{0}', space=sflag, size = 0x4, scoped, tag = 'scoped memory for tpu_custom_call.1']
    #allocation4 [shape = 's32[1]{0}', space=sflag, size = 0x4, scoped, tag = 'scoped memory for tpu_custom_call.1']
    #allocation5 [shape = 'u8[65536]{0}', space=vmem, size = 0x10000, scoped, tag = 'input window, operand 1, single buffered']
    #allocation6 [shape = 's32[1]{0}', space=sflag, size = 0x4, scoped, tag = 'scoped memory for tpu_custom_call.1']
    #allocation7 [shape = 'u8[8192]{0}', space=vmem, size = 0x2000, scoped, tag = 'output window, operand 0, single buffered']
    #allocation8 [shape = 'u8[8192]{0}', space=vmem, size = 0x2000, scoped, tag = 'output window, operand 1, single buffered']
    #allocation9 [shape = 's32[1]{0}', space=sflag, size = 0x4, scoped, tag = 'scoped memory for tpu_custom_call.1']
    #allocation10 [shape = 'u8[8192]{0}', space=vmem, size = 0x2000, scoped, tag = 'output window, operand 2, single buffered']
    %11 = vsyncpa [#allocation3], 0
    %12 = vsyncpa [#allocation6], 0
    %13 = vsyncpa [#allocation4], 0
    %14 = vsyncpa [#allocation9], 0
    // Predicated region
    $region2: #{tpu_custom_call.1} parent=1 // pred_check
      _
    $region3: #{tpu_custom_call.1} parent=1 // pred_check_branch
      %16 = sbr.rel (0) target = $region5
    $region4: #{tpu_custom_call.1} parent=1 // pred_region
      %s18 = ssub.s32 256, 256
      %19 = vsyncadd [#allocation3], %s18
      %s20 = sshll.u32 [#allocation2], 4
      %s21 = int_to_ptr.vmem [resolvable:$true] %s20
      %26 = dma.hbm_to_vmem [thread:$0]  %s0, 256, %s21, [#allocation3], 128, 128, 8
    $region5: #{tpu_custom_call.1} parent=1 // pred_fallthru
      _
    // Predicated region
    $region6: #{tpu_custom_call.1} parent=1 // pred_check
      _
    $region7: #{tpu_custom_call.1} parent=1 // pred_check_branch
      %28 = sbr.rel (0) target = $region9
    $region8: #{tpu_custom_call.1} parent=1 // pred_region
      %s30 = ssub.s32 2048, 2048
      %31 = vsyncadd [#allocation6], %s30
      %s32 = sshll.u32 [#allocation5], 4
      %s33 = int_to_ptr.vmem [resolvable:$true] %s32
      %38 = dma.hbm_to_vmem [thread:$0]  %s1, 2048, %s33, [#allocation6], 256, 256, 16
    $region9: #{tpu_custom_call.1} parent=1 // pred_fallthru
      _
    // Predicated region
    $region10: #{tpu_custom_call.1} parent=1 // pred_check
      _
    $region11: #{tpu_custom_call.1} parent=1 // pred_check_branch
      %40 = sbr.rel (0) target = $region13
    $region12: #{tpu_custom_call.1} parent=1 // pred_region
      _
    $region13: #{tpu_custom_call.1} parent=1 // pred_fallthru
      _
    // Predicated region
    $region14: #{tpu_custom_call.1} parent=1 // pred_check
      _
    $region15: #{tpu_custom_call.1} parent=1 // pred_check_branch
      %42 = sbr.rel (0) target = $region17
    $region16: #{tpu_custom_call.1} parent=1 // pred_region
      %43 = dma.done [#allocation3], 256
    $region17: #{tpu_custom_call.1} parent=1 // pred_fallthru
      _
    // Predicated region
    $region18: #{tpu_custom_call.1} parent=1 // pred_check
      _
    $region19: #{tpu_custom_call.1} parent=1 // pred_check_branch
      %45 = sbr.rel (0) target = $region21
    $region20: #{tpu_custom_call.1} parent=1 // pred_region
      %46 = dma.done [#allocation6], 2048
    $region21: #{tpu_custom_call.1} parent=1 // pred_fallthru
      _
    %v47 = vld [vmem:[#allocation2] sm:$0xff]
    %v48 = vld [vmem:[#allocation2 + $0x8] sm:$0xff]
    %v49 = vld [vmem:[#allocation5] sm:$0xff]
    %v50 = vld [vmem:[#allocation5 + $0x8] sm:$0xff]
    %v51 = vld [vmem:[#allocation5 + $0x10] sm:$0xff]
    %v52 = vld [vmem:[#allocation5 + $0x18] sm:$0xff]
    %v53 = vld [vmem:[#allocation5 + $0x20] sm:$0xff]
    %v54 = vld [vmem:[#allocation5 + $0x28] sm:$0xff]
    %v55 = vld [vmem:[#allocation5 + $0x30] sm:$0xff]
    %v56 = vld [vmem:[#allocation5 + $0x38] sm:$0xff]
    %v57 = vld [vmem:[#allocation5 + $0x40] sm:$0xff]
    %v58 = vld [vmem:[#allocation5 + $0x48] sm:$0xff]
    %v59 = vld [vmem:[#allocation5 + $0x50] sm:$0xff]
    %v60 = vld [vmem:[#allocation5 + $0x58] sm:$0xff]
    %v61 = vld [vmem:[#allocation5 + $0x60] sm:$0xff]
    %v62 = vld [vmem:[#allocation5 + $0x68] sm:$0xff]
    %v63 = vld [vmem:[#allocation5 + $0x70] sm:$0xff]
    %v64 = vld [vmem:[#allocation5 + $0x78] sm:$0xff]
    %v65 = vld [vmem:[%s2] sm:$0x3]
    %v67 = vlaneseq
    %v68 = vshrl.u32 %v67, 7
    %v69 = vsub.s32 0, %v68
    %v70 = vrot.slane %v65, %v69
    %v71 = vlaneseq
    %v72 = vshrl.u32 %v71, 7
    %v73 = vsub.s32 1, %v72
    %v74 = vrot.slane %v65, %v73
    %vm77 = vcmask 523264
    %v79 = vsel %vm77, %v47, 0
    %v82 = vsel %vm77, %v48, 0
    %84 = vmatprep.subr.mxu0 %v50
    %85 = vmatpush1.msra.mxu0 %v49
    %86 = vmatprep.subr.mxu0 %v52
    %87 = vmatpush1.msra.mxu0 %v51
    %88 = vmatprep.subr.mxu0 %v54
    %89 = vmatpush1.msra.mxu0 %v53
    %90 = vmatprep.subr.mxu0 %v56
    %91 = vmatpush1.msra.mxu0 %v55
    %92 = vmatprep.subr.mxu0 %v58
    %93 = vmatpush1.msra.mxu0 %v57
    %94 = vmatprep.subr.mxu0 %v60
    %95 = vmatpush1.msra.mxu0 %v59
    %96 = vmatprep.subr.mxu0 %v62
    %97 = vmatpush1.msra.mxu0 %v61
    %98 = vmatprep.subr.mxu0 %v64
    %99 = vmatpush1.msra.mxu0 %v63
    %100 = vmatprep.subr.mxu0 0.0
    %101 = vmatpush1.msra.mxu0 0.0
    %102 = vmatprep.subr.mxu0 0.0
    %103 = vmatpush1.msra.mxu0 0.0
    %104 = vmatprep.subr.mxu0 0.0
    %105 = vmatpush1.msra.mxu0 0.0
    %106 = vmatprep.subr.mxu0 0.0
    %107 = vmatpush1.msra.mxu0 0.0
    %108 = vmatprep.subr.mxu0 0.0
    %109 = vmatpush1.msra.mxu0 0.0
    %110 = vmatprep.subr.mxu0 0.0
    %111 = vmatpush1.msra.mxu0 0.0
    %112 = vmatprep.subr.mxu0 0.0
    %113 = vmatpush1.msra.mxu0 0.0
    %114 = vmatprep.subr.mxu0 0.0
    %115 = vmatpush1.msra.mxu0 0.0
    %116 = vmatprep.subr.mxu0 0.0
    %117 = vmatpush1.msra.mxu0 0.0
    %118 = vmatprep.subr.mxu0 0.0
    %119 = vmatpush1.msra.mxu0 0.0
    %120 = vmatprep.subr.mxu0 0.0
    %121 = vmatpush1.msra.mxu0 0.0
    %122 = vmatprep.subr.mxu0 0.0
    %123 = vmatpush1.msra.mxu0 0.0
    %124 = vmatprep.subr.mxu0 0.0
    %125 = vmatpush1.msra.mxu0 0.0
    %126 = vmatprep.subr.mxu0 0.0
    %127 = vmatpush1.msra.mxu0 0.0
    %128 = vmatprep.subr.mxu0 0.0
    %129 = vmatpush1.msra.mxu0 0.0
    %130 = vmatprep.subr.mxu0 0.0
    %131 = vmatpush1.msra.mxu0 0.0
    %132 = vmatprep.subr.mxu0 0.0
    %133 = vmatpush1.msra.mxu0 0.0
    %134 = vmatprep.subr.mxu0 0.0
    %135 = vmatpush1.msra.mxu0 0.0
    %136 = vmatprep.subr.mxu0 0.0
    %137 = vmatpush1.msra.mxu0 0.0
    %138 = vmatprep.subr.mxu0 0.0
    %139 = vmatpush1.msra.mxu0 0.0
    %140 = vmatprep.subr.mxu0 0.0
    %141 = vmatpush1.msra.mxu0 0.0
    %142 = vmatprep.subr.mxu0 0.0
    %143 = vmatpush1.msra.mxu0 0.0
    %144 = vmatprep.subr.mxu0 0.0
    %145 = vmatpush1.msra.mxu0 0.0
    %146 = vmatprep.subr.mxu0 0.0
    %147 = vmatpush1.msra.mxu0 0.0
    %148 = vmatprep.mubr.f32.mxu0 0.0
    %149 = vmatmul.mubr.f32.gmra.mrb[0].mxu0 %v79
    %v150 = vpop.f32.mrb[0].mxu0
    %v151 = vadd.f32 %v70, %v150
    %v152 = vpop.f32.mrb[0].mxu0
    %v153 = vadd.f32 %v74, %v152
    %154 = vmatprep.mubr.f32.mxu0 0.0
    %155 = vmatmul.mubr.f32.gmra.mrb[0].mxu0 %v82
    %v156 = vpop.f32.mrb[0].mxu0
    %v157 = vadd.f32 %v70, %v156
    %v158 = vpop.f32.mrb[0].mxu0
    %v159 = vadd.f32 %v74, %v158
    %160 = vdwg.mxu0
    %161 = vst.msk [vmem:[#allocation7] sm:$0xff] %vm77, %v151
    %162 = vst.msk [vmem:[#allocation7 + $0x8] sm:$0xff] %vm77, %v157
    %165 = vrot.lane.b32.xlu0 %v151, 64
    %v166 = vpop.permute.xlu0 %165
    %167 = vrot.lane.b32.xlu0 %v157, 64
    %v168 = vpop.permute.xlu0 %167
    %171 = vst.msk [vmem:[#allocation8] sm:$0xff] %vm77, %v166
    %172 = vst.msk [vmem:[#allocation8 + $0x8] sm:$0xff] %vm77, %v168
    %173 = vst.msk [vmem:[#allocation10] sm:$0xff] %vm77, %v153
    %174 = vst.msk [vmem:[#allocation10 + $0x8] sm:$0xff] %vm77, %v159
    // Predicated region
    $region22: #{tpu_custom_call.1} parent=1 // pred_check
      _
    $region23: #{tpu_custom_call.1} parent=1 // pred_check_branch
      %176 = sbr.rel (0) target = $region25
    $region24: #{tpu_custom_call.1} parent=1 // pred_region
      %s178 = ssub.s32 256, 256
      %179 = vsyncadd [#allocation4], %s178
      %s180 = sshll.u32 [#allocation7], 4
      %s181 = int_to_ptr.vmem [resolvable:$true] %s180
      %186 = dma.vmem_to_hbm [thread:$0]  %s181, 256, %s3, [#allocation4], 128, 128, 8
    $region25: #{tpu_custom_call.1} parent=1 // pred_fallthru
      _
    // Predicated region
    $region26: #{tpu_custom_call.1} parent=1 // pred_check
      _
    $region27: #{tpu_custom_call.1} parent=1 // pred_check_branch
      %188 = sbr.rel (0) target = $region29
    $region28: #{tpu_custom_call.1} parent=1 // pred_region
      %s190 = ssub.s32 256, 256
      %191 = vsyncadd [#allocation9], %s190
      %s192 = sshll.u32 [#allocation8], 4
      %s193 = int_to_ptr.vmem [resolvable:$true] %s192
      %198 = dma.vmem_to_hbm [thread:$0]  %s193, 256, %s4, [#allocation9], 128, 128, 8
    $region29: #{tpu_custom_call.1} parent=1 // pred_fallthru
      _
    // Predicated region
    $region30: #{tpu_custom_call.1} parent=1 // pred_check
      _
    $region31: #{tpu_custom_call.1} parent=1 // pred_check_branch
      %200 = sbr.rel (0) target = $region33
    $region32: #{tpu_custom_call.1} parent=1 // pred_region
      %s202 = ssub.s32 256, 256
      %203 = vsyncadd [#allocation9], %s202
      %s204 = sshll.u32 [#allocation10], 4
      %s205 = int_to_ptr.vmem [resolvable:$true] %s204
      %210 = dma.vmem_to_hbm [thread:$0]  %s205, 256, %s5, [#allocation9], 128, 128, 8
    $region33: #{tpu_custom_call.1} parent=1 // pred_fallthru
      _
    // Predicated region
    $region34: #{tpu_custom_call.1} parent=1 // pred_check
      _
    $region35: #{tpu_custom_call.1} parent=1 // pred_check_branch
      %212 = sbr.rel (0) target = $region37
    $region36: #{tpu_custom_call.1} parent=1 // pred_region
      %213 = dma.done [#allocation4], 256
    $region37: #{tpu_custom_call.1} parent=1 // pred_fallthru
      _
    // Predicated region
    $region38: #{tpu_custom_call.1} parent=1 // pred_check
      _
    $region39: #{tpu_custom_call.1} parent=1 // pred_check_branch
      %215 = sbr.rel (0) target = $region41
    $region40: #{tpu_custom_call.1} parent=1 // pred_region
      %216 = dma.done [#allocation9], 256
    $region41: #{tpu_custom_call.1} parent=1 // pred_fallthru
      _
    // Predicated region
    $region42: #{tpu_custom_call.1} parent=1 // pred_check
      _
    $region43: #{tpu_custom_call.1} parent=1 // pred_check_branch
      %218 = sbr.rel (0) target = $region45
    $region44: #{tpu_custom_call.1} parent=1 // pred_region
      %219 = dma.done [#allocation9], 256
    $region45: #{tpu_custom_call.1} parent=1 // pred_fallthru
      _
    %220 = vsyncpa [#allocation3], 1
    %221 = vsyncpa [#allocation6], 1
    %222 = vsyncpa [#allocation4], 1
    %223 = vsyncpa [#allocation9], 1

</llo_original>
